<compile_context>
chip_gen: v7x
topology: tpu7x:2x2x1
jax: 0.10.0
libtpu: 0.0.40
codegen_flags: <defaults>
</compile_context>

<pallas_src>
import functools

import jax
import jax.numpy as jnp
from jax.experimental import pallas as pl
from jax.experimental.pallas import tpu as pltpu

_LANE = 128
_SUB = 8


def _cdiv(a, b):
    return -(-a // b)


def _round_up(a, m):
    return _cdiv(a, m) * m


def _choose_tiles(R0, C, CW, x_bytes, t_bytes, sub_mult, N):
    """Pick (TR, n_blocks, pad_rows) for the (rows, 128) spatial tiling.

    TR is byte-budgeted (~8 MiB of streamed inputs per pipeline buffer) and is
    always a multiple of `sub_mult` so every BlockSpec satisfies its sublane
    tiling; the last block may be partial (masked in-kernel) instead of padding
    the arrays.  `pad_rows` is only True for tiny volumes (R0 < sub_mult).
    """
    budget = 8 * 1024 * 1024  # bytes of streamed inputs per pipeline buffer
    bytes_per_row = _LANE * (C * x_bytes + CW * 4 + t_bytes)
    tr_budget = max(sub_mult, (budget // bytes_per_row) // sub_mult * sub_mult)

    if R0 < sub_mult:
        # Tiny volume: pad the rows up to one aligned block (negligible copy).
        return sub_mult, 1, True

    n_blocks = max(1, _cdiv(R0, tr_budget))
    TR = _round_up(_cdiv(R0, n_blocks), sub_mult)
    while TR > R0:            # keep every block inside the (unpadded) array
        n_blocks += 1
        TR = _round_up(_cdiv(R0, n_blocks), sub_mult)

    # v7x megacore balance: prefer >= 4 total grid steps when the spatial
    # extent allows, so ("parallel","parallel") can split across both TCs.
    min_steps = 4
    if n_blocks * N < min_steps:
        want = _cdiv(min_steps, N)
        if R0 >= want * sub_mult:
            TR2 = _round_up(_cdiv(R0, want), sub_mult)
            if TR2 <= R0:
                TR = TR2
    n_blocks = _cdiv(R0, TR)
    return TR, n_blocks, False


def _pwce_kernel(*refs, C, TR, S, ignore_index, w_per_channel, has_cw, need_mask):
    """One grid step: one batch element x one spatial tile.

    refs (in order):
      x_ref  : (1, C, TR, 128)   logits tile (original dtype; upcast here)
      w_ref  : (C|1, TR, 128)    per-pixel weights (class weights folded in for
                                 the N == C path)
      t_ref  : (1, TR, 128)      labels (int8 or int32)
      cw_ref : (C, 128)          class weights (only when N == 1 with weights)
      out_ref: (1, 1, 8, 128)    lane-dense partial sum for this (n, tile)
    """
    if has_cw:
        x_ref, w_ref, t_ref, cw_ref, out_ref = refs
    else:
        x_ref, w_ref, t_ref, out_ref = refs
        cw_ref = None

    x = x_ref[0].astype(jnp.float32)          # (C, TR, 128)
    t = t_ref[0].astype(jnp.int32)            # (TR, 128)

    # Numerically stable log-softmax denominator over the channel axis.
    m = jnp.max(x, axis=0)                                   # (TR, 128)
    lse = m + jnp.log(jnp.sum(jnp.exp(x - m), axis=0))       # (TR, 128)

    # One-hot gather via selects (no float one-hot + multiplies).
    chan = jax.lax.broadcasted_iota(jnp.int32, (C, TR, _LANE), 0)
    eq = chan == t                                           # (C, TR, 128) bool

    x_t = jnp.sum(jnp.where(eq, x, 0.0), axis=0)             # x[t]   (TR, 128)

    if w_per_channel:
        # N == C: per-class per-pixel weights; class weights folded in wrapper.
        w = w_ref[...].astype(jnp.float32)                   # (C, TR, 128)
        wt = jnp.sum(jnp.where(eq, w, 0.0), axis=0)          # (TR, 128)
    else:
        # N == 1: the per-pixel weight is channel independent.
        wt = w_ref[0].astype(jnp.float32)                    # (TR, 128)
        if has_cw:
            cw = cw_ref[...]                                 # (C, 128)
            wt = wt + jnp.sum(jnp.where(eq, cw[:, None, :], 0.0), axis=0)
        else:
            wt = wt + 1.0                                    # default class weights == 1

    contrib = -wt * (x_t - lse)                              # (TR, 128)

    valid = None
    if need_mask:
        # Last tile may cover rows past the real data (stale/garbage VMEM or
        # wrapper padding).  Use jnp.where (not multiply): garbage may be NaN.
        si = pl.program_id(0)
        row = jax.lax.broadcasted_iota(jnp.int32, (TR, _LANE), 0) + si * TR
        lane = jax.lax.broadcasted_iota(jnp.int32, (TR, _LANE), 1)
        valid = row * _LANE + lane < S
    if ignore_index is not None:
        iv = t != ignore_index
        valid = iv if valid is None else jnp.logical_and(valid, iv)
    if valid is not None:
        contrib = jnp.where(valid, contrib, 0.0)

    # Lane-dense (8, 128) partial sum: pure VALU adds, unmasked store.
    out_ref[0, 0] = contrib.reshape(TR // _SUB, _SUB, _LANE).sum(axis=0)


def pixelwise_cross_entropy_loss(logits, target, weights,
                                 class_weights=None, ignore_index=None):
    """JAX/Pallas equivalent of PixelWiseCrossEntropyLoss.forward."""
    N, C, D, H, W = logits.shape
    assert target.shape == (N, D, H, W)
    assert weights.shape == target.shape
    # weights.unsqueeze(0).expand_as(input) in the module requires N == C or N == 1.
    assert N == C or N == 1, (
        "PixelWiseCrossEntropyLoss's weight expand requires N == C or N == 1")
    S = D * H * W

    x_bytes = logits.dtype.itemsize
    use_i8 = (C <= 127) and (ignore_index is None or -128 <= ignore_index <= 127)
    t_dtype = jnp.int8 if use_i8 else jnp.int32
    t_bytes = jnp.dtype(t_dtype).itemsize
    sub_x = 16 if x_bytes == 2 else 8          # bf16/f16 need 16-row sublane tiles
    sub_t = 32 if use_i8 else 8                # int8 needs 32-row sublane tiles
    sub_mult = max(sub_x, sub_t, _SUB)

    w_per_channel = (N == C)
    CW = C if w_per_channel else 1

    # ---- spatial tiling: rows of 128 lanes ----
    R0 = _cdiv(S, _LANE)
    TR, n_blocks, pad_rows = _choose_tiles(R0, C, CW, x_bytes, t_bytes, sub_mult, N)
    R_arr = TR if pad_rows else R0             # rows the (padded) arrays will have
    S_arr = R_arr * _LANE                      # spatial length after any padding
    need_mask = (n_blocks * TR * _LANE != S)   # any padded / partial-block region?

    cw = None if class_weights is None else class_weights.astype(jnp.float32).reshape(C)

    # Keep the logits' HBM dtype (bf16 stays bf16); the kernel upcasts to f32.
    x = logits.reshape(N, C, S)
    t = target.reshape(N, S).astype(t_dtype)
    w = weights.reshape(N, S).astype(jnp.float32)
    if w_per_channel:
        # expand quirk for N == C: w_exp[n, c, s] == weights[c, s].  Fold the
        # per-class weight in here (one cheap pass over the C*S map) so the
        # kernel gathers a single weight tensor.
        w = w + (jnp.float32(1.0) if cw is None else cw[:, None])
    has_cw = (not w_per_channel) and (cw is not None)

    if S_arr != S:
        # Only taken for truly ragged S (S % 128 != 0) or tiny volumes.
        # TODO(synk): a small remainder pallas_call would avoid this full copy
        # for ragged S, at significant extra complexity.
        pad = S_arr - S
        x = jnp.pad(x, ((0, 0), (0, 0), (0, pad)))
        t = jnp.pad(t, ((0, 0), (0, pad)))     # padded pixels masked in-kernel
        w = jnp.pad(w, ((0, 0), (0, pad)))

    x = x.reshape(N, C, R_arr, _LANE)
    t = t.reshape(N, R_arr, _LANE)
    w = w.reshape(CW, R_arr, _LANE)

    operands = [x, w, t]
    in_specs = [
        # TODO(synk): sweep pipeline_mode=pl.Buffered(3) on the logits spec if a
        # profile shows exposed DMA time at step boundaries.
        pl.BlockSpec((1, C, TR, _LANE), lambda si, n: (n, 0, si, 0)),   # logits
        pl.BlockSpec((CW, TR, _LANE),   lambda si, n: (0, si, 0)),      # pixel weights (resident across n)
        pl.BlockSpec((1, TR, _LANE),    lambda si, n: (n, si, 0)),      # labels
    ]
    if has_cw:
        operands.append(jnp.broadcast_to(cw[:, None], (C, _LANE)))
        in_specs.append(pl.BlockSpec((C, _LANE), lambda si, n: (0, 0)))  # class weights (resident)

    # Double-buffered VMEM footprint estimate -> explicit scoped-VMEM limit
    # (>= 32 MiB covers v5e's 16 MiB default; <= 48 MiB stays inside v7x's
    # 64 MiB physical VMEM per TensorCore).
    per_buf = TR * _LANE * (C * x_bytes + CW * 4 + t_bytes)
    footprint = 2 * per_buf + 2 * (_SUB * _LANE * 4) + (2 * C * _LANE * 4 if has_cw else 0)
    vmem_limit = int(min(48 << 20, max(32 << 20, footprint + (8 << 20))))

    kernel = functools.partial(
        _pwce_kernel, C=C, TR=TR, S=S, ignore_index=ignore_index,
        w_per_channel=w_per_channel, has_cw=has_cw, need_mask=need_mask)

    partials = pl.pallas_call(
        kernel,
        out_shape=jax.ShapeDtypeStruct((N, n_blocks, _SUB, _LANE), jnp.float32),
        grid_spec=pltpu.PrefetchScalarGridSpec(
            num_scalar_prefetch=0,
            # spatial tile OUTER, batch INNER: the weight / class-weight blocks
            # keep the same block index across the inner loop -> fetched once
            # per spatial tile.
            grid=(n_blocks, N),
            in_specs=in_specs,
            out_specs=pl.BlockSpec((1, 1, _SUB, _LANE),
                                   lambda si, n: (n, si, 0, 0)),
        ),
        compiler_params=pltpu.CompilerParams(
            # every output block is written exactly once -> fully parallel grid.
            dimension_semantics=("parallel", "parallel"),
            vmem_limit_bytes=vmem_limit),
    )(*operands)

    # result.mean() over all N*C*D*H*W elements of the (never materialized) result.
    return jnp.sum(partials) / jnp.float32(N * C * D * H * W)


def _reference(logits, target, weights, class_weights, ignore_index=None):
    """Pure-JAX reference mirroring the PyTorch module line-by-line."""
    N, C = logits.shape[:2]
    logits = logits.astype(jnp.float32)
    logp = jax.nn.log_softmax(logits, axis=1)
    onehot = (target[:, None, ...] ==
              jnp.arange(C).reshape(1, C, 1, 1, 1)).astype(jnp.float32)
    if ignore_index is not None:
        mask = (target[:, None, ...] != ignore_index).astype(jnp.float32)
        logp = logp * mask
        onehot = onehot * mask
    # weights.unsqueeze(0).expand_as(input) quirk (needs N == C or N == 1).
    w_exp = jnp.broadcast_to(weights[None].astype(jnp.float32), logits.shape)
    cw = (jnp.ones((C,), jnp.float32) if class_weights is None
          else class_weights.astype(jnp.float32)).reshape(1, C, 1, 1, 1)
    result = -(cw + w_exp) * onehot * logp
    return jnp.mean(result)


if __name__ == "__main__":
    def _check(name, got, want, tol=1e-5):
        assert jnp.allclose(got, want, rtol=tol, atol=tol), (name, float(got), float(want))

    # Test 1: N == C, S multiple of 128, explicit class weights (folded path).
    N, C, D, H, W = 4, 4, 8, 16, 16
    k1, k2, k3 = jax.random.split(jax.random.PRNGKey(0), 3)
    logits = jax.random.normal(k1, (N, C, D, H, W), dtype=jnp.float32)
    target = jax.random.randint(k2, (N, D, H, W), 0, C, dtype=jnp.int32)
    weights = jax.random.uniform(k3, (N, D, H, W), dtype=jnp.float32)
    class_weights = 0.5 + 0.5 * jnp.arange(C, dtype=jnp.float32)
    loss = jax.block_until_ready(
        pixelwise_cross_entropy_loss(logits, target, weights, class_weights))
    _check("n_eq_c", loss, _reference(logits, target, weights, class_weights))

    # Test 1b: same data with bf16 logits (bf16 HBM stream, f32 in-kernel math).
    loss_bf = jax.block_until_ready(
        pixelwise_cross_entropy_loss(logits.astype(jnp.bfloat16), target, weights,
                                     class_weights))
    _check("bf16", loss_bf,
           _reference(logits.astype(jnp.bfloat16), target, weights, class_weights),
           tol=1e-4)

    # Test 2: ragged spatial size (S % 128 != 0), no class weights, ignore_index.
    N2, C2, D2, H2, W2 = 3, 3, 4, 10, 10
    k4, k5, k6 = jax.random.split(jax.random.PRNGKey(1), 3)
    logits2 = jax.random.normal(k4, (N2, C2, D2, H2, W2), dtype=jnp.float32)
    target2 = jax.random.randint(k5, (N2, D2, H2, W2), -1, C2, dtype=jnp.int32)
    weights2 = jax.random.uniform(k6, (N2, D2, H2, W2), dtype=jnp.float32)
    loss2 = jax.block_until_ready(
        pixelwise_cross_entropy_loss(logits2, target2, weights2, None, ignore_index=-1))
    _check("ragged_ignore", loss2,
           _reference(logits2, target2, weights2, None, ignore_index=-1))

    # Test 3: N == 1 with class weights (no HBM weight broadcast; in-kernel gather).
    N3, C3, D3, H3, W3 = 1, 5, 8, 32, 32
    k7, k8, k9 = jax.random.split(jax.random.PRNGKey(2), 3)
    logits3 = jax.random.normal(k7, (N3, C3, D3, H3, W3), dtype=jnp.float32)
    target3 = jax.random.randint(k8, (N3, D3, H3, W3), 0, C3, dtype=jnp.int32)
    weights3 = jax.random.uniform(k9, (N3, D3, H3, W3), dtype=jnp.float32)
    cw3 = jnp.linspace(0.5, 2.0, C3, dtype=jnp.float32)
    loss3 = jax.block_until_ready(
        pixelwise_cross_entropy_loss(logits3, target3, weights3, cw3))
    _check("n1_cw", loss3, _reference(logits3, target3, weights3, cw3))

    # Test 4: N == 1 without class weights (wt = w + 1 path).
    loss4 = jax.block_until_ready(
        pixelwise_cross_entropy_loss(logits3, target3, weights3, None))
    _check("n1_nocw", loss4, _reference(logits3, target3, weights3, None))

    # Test 5: uneven trailing spatial block (R0 not a multiple of the tile rows),
    # exercising the no-pad partial-block + in-kernel mask path.
    N5, C5, D5, H5, W5 = 2, 2, 5, 32, 32
    ka, kb, kc = jax.random.split(jax.random.PRNGKey(3), 3)
    logits5 = jax.random.normal(ka, (N5, C5, D5, H5, W5), dtype=jnp.float32)
    target5 = jax.random.randint(kb, (N5, D5, H5, W5), 0, C5, dtype=jnp.int32)
    weights5 = jax.random.uniform(kc, (N5, D5, H5, W5), dtype=jnp.float32)
    loss5 = jax.block_until_ready(
        pixelwise_cross_entropy_loss(logits5, target5, weights5, None))
    _check("uneven_tail", loss5, _reference(logits5, target5, weights5, None))

    print("KERNEL_OK")
</pallas_src>

<mosaic_0001>
module attributes {stable_mosaic.version = 11 : i64} {
  func.func @_pwce_kernel(%arg0: i32, %arg1: i32, %arg2: memref<1x4x32x128xf32, #tpu.memory_space<vmem>>, %arg3: memref<4x32x128xf32, #tpu.memory_space<vmem>>, %arg4: memref<1x32x128xi8, #tpu.memory_space<vmem>>, %arg5: memref<1x1x8x128xf32, #tpu.memory_space<vmem>>) attributes {dimension_semantics = [#tpu.dimension_semantics<parallel>, #tpu.dimension_semantics<parallel>], iteration_bounds = array<i64: 1, 4>, scalar_prefetch = 0 : i64, scratch_operands = 0 : i64, tpu.core_type = #tpu.core_type<tc>, window_params = [{transform_indices = @transform_0, window_bounds = array<i64: 1, 4, 32, 128>}, {transform_indices = @transform_1, window_bounds = array<i64: 4, 32, 128>}, {transform_indices = @transform_2, window_bounds = array<i64: 1, 32, 128>}, {transform_indices = @transform_3, window_bounds = array<i64: 1, 1, 8, 128>}]} {
    %c0 = arith.constant 0 : index
    %c0_0 = arith.constant 0 : index
    %c0_1 = arith.constant 0 : index
    %c0_2 = arith.constant 0 : index
    %0 = vector.load %arg2[%c0, %c0_0, %c0_1, %c0_2] : memref<1x4x32x128xf32, #tpu.memory_space<vmem>>, vector<1x4x32x128xf32>
    %1 = vector.shape_cast %0 : vector<1x4x32x128xf32> to vector<4x32x128xf32>
    %c0_3 = arith.constant 0 : index
    %c0_4 = arith.constant 0 : index
    %c0_5 = arith.constant 0 : index
    %2 = vector.load %arg4[%c0_3, %c0_4, %c0_5] : memref<1x32x128xi8, #tpu.memory_space<vmem>>, vector<1x32x128xi8>
    %3 = vector.shape_cast %2 : vector<1x32x128xi8> to vector<32x128xi8>
    %4 = arith.extsi %3 : vector<32x128xi8> to vector<32x128xi32>
    %cst = arith.constant dense<0xFF800000> : vector<32x128xf32>
    %5 = vector.multi_reduction <maximumf>, %1, %cst [0] : vector<4x32x128xf32> to vector<32x128xf32>
    %6 = vector.shape_cast %5 : vector<32x128xf32> to vector<1x32x128xf32>
    %7 = vector.broadcast %6 : vector<1x32x128xf32> to vector<4x32x128xf32>
    %8 = arith.subf %1, %7 : vector<4x32x128xf32>
    %9 = math.exp %8 : vector<4x32x128xf32>
    %cst_6 = arith.constant dense<0.000000e+00> : vector<32x128xf32>
    %10 = vector.multi_reduction <add>, %9, %cst_6 [0] : vector<4x32x128xf32> to vector<32x128xf32>
    %11 = math.log %10 : vector<32x128xf32>
    %12 = arith.addf %5, %11 : vector<32x128xf32>
    %13 = tpu.iota {dimensions = array<i32: 0>} : vector<4x32x128xi32>
    %14 = vector.shape_cast %4 : vector<32x128xi32> to vector<1x32x128xi32>
    %15 = vector.broadcast %14 : vector<1x32x128xi32> to vector<4x32x128xi32>
    %16 = arith.cmpi eq, %13, %15 : vector<4x32x128xi32>
    %cst_7 = arith.constant 0.000000e+00 : f32
    %17 = vector.broadcast %cst_7 : f32 to vector<4x32x128xf32>
    %18 = arith.select %16, %1, %17 : vector<4x32x128xi1>, vector<4x32x128xf32>
    %cst_8 = arith.constant dense<0.000000e+00> : vector<32x128xf32>
    %19 = vector.multi_reduction <add>, %18, %cst_8 [0] : vector<4x32x128xf32> to vector<32x128xf32>
    %c0_9 = arith.constant 0 : index
    %c0_10 = arith.constant 0 : index
    %c0_11 = arith.constant 0 : index
    %20 = vector.load %arg3[%c0_9, %c0_10, %c0_11] : memref<4x32x128xf32, #tpu.memory_space<vmem>>, vector<4x32x128xf32>
    %cst_12 = arith.constant 0.000000e+00 : f32
    %21 = vector.broadcast %cst_12 : f32 to vector<4x32x128xf32>
    %22 = arith.select %16, %20, %21 : vector<4x32x128xi1>, vector<4x32x128xf32>
    %cst_13 = arith.constant dense<0.000000e+00> : vector<32x128xf32>
    %23 = vector.multi_reduction <add>, %22, %cst_13 [0] : vector<4x32x128xf32> to vector<32x128xf32>
    %cst_14 = arith.constant 0.000000e+00 : f32
    %24 = vector.broadcast %cst_14 : f32 to vector<32x128xf32>
    %25 = arith.subf %24, %23 : vector<32x128xf32>
    %26 = arith.subf %19, %12 : vector<32x128xf32>
    %27 = arith.mulf %25, %26 : vector<32x128xf32>
    %28 = tpu.iota {dimensions = array<i32: 0>} : vector<32x128xi32>
    %c32_i32 = arith.constant 32 : i32
    %29 = arith.muli %arg0, %c32_i32 : i32
    %30 = vector.broadcast %29 : i32 to vector<32x128xi32>
    %31 = arith.addi %28, %30 : vector<32x128xi32>
    %32 = tpu.iota {dimensions = array<i32: 1>} : vector<32x128xi32>
    %c128_i32 = arith.constant 128 : i32
    %33 = vector.broadcast %c128_i32 : i32 to vector<32x128xi32>
    %34 = arith.muli %31, %33 : vector<32x128xi32>
    %35 = arith.addi %34, %32 : vector<32x128xi32>
    %c2048_i32 = arith.constant 2048 : i32
    %36 = vector.broadcast %c2048_i32 : i32 to vector<32x128xi32>
    %37 = arith.cmpi slt, %35, %36 : vector<32x128xi32>
    %cst_15 = arith.constant 0.000000e+00 : f32
    %38 = vector.broadcast %cst_15 : f32 to vector<32x128xf32>
    %39 = arith.select %37, %27, %38 : vector<32x128xi1>, vector<32x128xf32>
    %40 = vector.shape_cast %39 : vector<32x128xf32> to vector<4x8x128xf32>
    %cst_16 = arith.constant dense<0.000000e+00> : vector<8x128xf32>
    %41 = vector.multi_reduction <add>, %40, %cst_16 [0] : vector<4x8x128xf32> to vector<8x128xf32>
    %c0_17 = arith.constant 0 : index
    %c0_18 = arith.constant 0 : index
    %c0_19 = arith.constant 0 : index
    %c0_20 = arith.constant 0 : index
    %42 = vector.load %arg5[%c0_17, %c0_18, %c0_19, %c0_20] : memref<1x1x8x128xf32, #tpu.memory_space<vmem>>, vector<1x1x8x128xf32>
    %43 = vector.shape_cast %42 : vector<1x1x8x128xf32> to vector<8x128xf32>
    %44 = vector.shape_cast %41 : vector<8x128xf32> to vector<1x1x8x128xf32>
    tpu.vector_store %arg5[%c0_17, %c0_18, %c0_19, %c0_20], %44 {strides = array<i32>} : memref<1x1x8x128xf32, #tpu.memory_space<vmem>>, vector<1x1x8x128xf32>,
    return
  }
  func.func @transform_0(%arg0: i32, %arg1: i32) -> (i32, i32, i32, i32) {
    %c0_i32 = arith.constant 0 : i32
    %c0_i32_0 = arith.constant 0 : i32
    %c0_i32_1 = arith.constant 0 : i32
    return %arg1, %c0_i32, %arg0, %c0_i32_0 : i32, i32, i32, i32
  }
  func.func @transform_1(%arg0: i32, %arg1: i32) -> (i32, i32, i32) {
    %c0_i32 = arith.constant 0 : i32
    %c0_i32_0 = arith.constant 0 : i32
    %c0_i32_1 = arith.constant 0 : i32
    return %c0_i32, %arg0, %c0_i32_0 : i32, i32, i32
  }
  func.func @transform_2(%arg0: i32, %arg1: i32) -> (i32, i32, i32) {
    %c0_i32 = arith.constant 0 : i32
    %c0_i32_0 = arith.constant 0 : i32
    return %arg1, %arg0, %c0_i32 : i32, i32, i32
  }
  func.func @transform_3(%arg0: i32, %arg1: i32) -> (i32, i32, i32, i32) {
    %c0_i32 = arith.constant 0 : i32
    %c0_i32_0 = arith.constant 0 : i32
    %c0_i32_1 = arith.constant 0 : i32
    return %arg1, %arg0, %c0_i32, %c0_i32_0 : i32, i32, i32, i32
  }
}

</mosaic_0001>

<llo_original>
// kernel: tpu_custom_call.1
$region0: #{tpu_custom_call.1}
  #allocation0 [shape = 'u32[]', space=smem, size = 0x4, offset = 0x4, fixed_abs, tag = 'smem constant byte address 0x4 - core index']
  #allocation1 [shape = 'u32[144,128]{1,0:T(1,128)}', space=vmem, size = 0x12000, scoped, tag = 'internal scratch']
  %s0 = inlined_call_operand.hbm [shape: f32[4,4,32,128], index: 0, kind: input, shape index: {}]
  %s1 = inlined_call_operand.hbm [shape: f32[4,32,128], index: 1, kind: input, shape index: {}]
  %s2 = inlined_call_operand.hbm [shape: s8[4,32,128], index: 2, kind: input, shape index: {}]
  %s3 = inlined_call_operand.hbm [shape: f32[4,1,8,128], index: 3, kind: output, shape index: {}]
  %s4 = sld [smem:[#allocation0]]
  $region57: #{tpu_custom_call.1} parent=0
    _
  %s6 = ssub.s32 1, %s4
  %s7 = scalar_select 0, %s6, %s4
  $region1: #{tpu_custom_call.1} parent=0
    #allocation2 [shape = 'u8[131072]{0}', space=vmem, size = 0x20000, scoped, tag = 'input window, operand 0']
    #allocation3 [shape = 's32[2]{0}', space=sflag, size = 0x8, scoped, tag = 'scoped memory for tpu_custom_call.1']
    #allocation4 [shape = 's32[2]{0}', space=sflag, size = 0x8, scoped, tag = 'scoped memory for tpu_custom_call.1']
    #allocation5 [shape = 'u8[65536]{0}', space=vmem, size = 0x10000, scoped, tag = 'input window, operand 1, single buffered']
    #allocation6 [shape = 's32[1]{0}', space=sflag, size = 0x4, scoped, tag = 'scoped memory for tpu_custom_call.1']
    #allocation7 [shape = 'u8[8192]{0}', space=vmem, size = 0x2000, scoped, tag = 'input window, operand 2']
    #allocation8 [shape = 'u8[8192]{0}', space=vmem, size = 0x2000, scoped, tag = 'output window, operand 0']
    %8 = vsyncpa [#allocation3], 0
    %s9 = scalar_lea.sflag [#allocation3], 1
    %10 = vsyncpa %s9, 0
    %11 = vsyncpa [#allocation6], 0
    %12 = vsyncpa [#allocation4], 0
    %s13 = scalar_lea.sflag [#allocation4], 1
    %14 = vsyncpa %s13, 0
    loop: start=0, step=1, limit=6
    $region2: #{tpu_custom_call.1} parent=1 // loop_pre_header
      _
    $region3: #{tpu_custom_call.1} parent=1 // loop_header
      %s16 = sphi 0, %s20
      %p17 = scmp.ge.s32.totalorder %s16, 6
      %s23 = sphi 0, %s35
      %s24 = sphi 0, %s31
      %s25 = sphi 0, %s23
      %s26 = sphi 0, %s24
      %s27 = sphi 0, %s25
      %s28 = sphi 0, %s26
      %s40 = sphi 0, %s42
      %s43 = sphi 0, %s40
      %s44 = sphi 0, %s43
      %s60 = sphi 0, %s44
      %s66 = sphi 0, %s68
      %s69 = sphi 0, %s66
      %s70 = sphi 0, %s69
      %s86 = sphi 0, %s70
      %s94 = sphi 0, %s96
      %s97 = sphi 0, %s94
      %s98 = sphi 0, %s97
      %s114 = sphi 0, %s98
      %s122 = sphi 0, %s124
      %s125 = sphi 0, %s122
      %s126 = sphi 0, %s125
      %s142 = sphi 0, %s126
    $region4: #{tpu_custom_call.1} parent=1 // loop_header_branch
      %19 = sbr.rel (%p17) target = $region8
    $region5: #{tpu_custom_call.1} parent=1 // loop_body
      %s21 = ssub.s32 %s16, 1
      %s22 = ssub.s32 %s16, 2
      %s29 = sadd.s32 1, %s24
      %p30 = scmp.ge.s32.totalorder %s29, 4
      %s31 = scalar_select %p30, 0, %s29
      %s32 = sadd.s32 1, %s23
      %s33 = scalar_select %p30, %s32, %s23
      %p34 = scmp.ge.s32.totalorder %s33, 1
      %s35 = scalar_select %p34, 0, %s33
      %s36 = ssub.s32 %s24, %s31
      %s37 = ssub.s32 %s23, %s35
      %s38 = sor.u32 %s36, %s37
      %p39 = scmp.eq.s32.totalorder %s38, 0
      %s41 = sadd.s32 %s40, 1
      %s42 = scalar_select %p39, %s40, %s41
      %p45 = pneg %p39
      %p46 = scmp.eq.s32.totalorder %s16, 3
      %p47 = por %p45, %p46
      %p48 = scmp.ne.s32.totalorder %s40, %s43
      %p49 = scmp.eq.s32.totalorder %s16, 0
      %p50 = por %p48, %p49
      %p51 = scmp.ne.s32.totalorder %s40, %s43
      %p52 = scmp.eq.s32.totalorder %s21, 3
      %p53 = por %p51, %p52
      %p54 = scmp.ne.s32.totalorder %s43, %s44
      %p55 = scmp.eq.s32.totalorder %s21, 0
      %p56 = por %p54, %p55
      %p57 = scmp.ne.s32.totalorder %s43, %s44
      %p58 = scmp.eq.s32.totalorder %s22, 3
      %p59 = por %p57, %p58
      %p61 = scmp.ne.s32.totalorder %s44, %s60
      %p62 = scmp.eq.s32.totalorder %s22, 0
      %p63 = por %p61, %p62
      %s64 = ssub.s32 %s23, %s35
      %p65 = scmp.eq.s32.totalorder %s64, 0
      %s67 = sadd.s32 %s66, 1
      %s68 = scalar_select %p65, %s66, %s67
      %p71 = pneg %p65
      %p72 = scmp.eq.s32.totalorder %s16, 3
      %p73 = por %p71, %p72
      %p74 = scmp.ne.s32.totalorder %s66, %s69
      %p75 = scmp.eq.s32.totalorder %s16, 0
      %p76 = por %p74, %p75
      %p77 = scmp.ne.s32.totalorder %s66, %s69
      %p78 = scmp.eq.s32.totalorder %s21, 3
      %p79 = por %p77, %p78
      %p80 = scmp.ne.s32.totalorder %s69, %s70
      %p81 = scmp.eq.s32.totalorder %s21, 0
      %p82 = por %p80, %p81
      %p83 = scmp.ne.s32.totalorder %s69, %s70
      %p84 = scmp.eq.s32.totalorder %s22, 3
      %p85 = por %p83, %p84
      %p87 = scmp.ne.s32.totalorder %s70, %s86
      %p88 = scmp.eq.s32.totalorder %s22, 0
      %p89 = por %p87, %p88
      %s90 = ssub.s32 %s24, %s31
      %s91 = ssub.s32 %s23, %s35
      %s92 = sor.u32 %s90, %s91
      %p93 = scmp.eq.s32.totalorder %s92, 0
      %s95 = sadd.s32 %s94, 1
      %s96 = scalar_select %p93, %s94, %s95
      %p99 = pneg %p93
      %p100 = scmp.eq.s32.totalorder %s16, 3
      %p101 = por %p99, %p100
      %p102 = scmp.ne.s32.totalorder %s94, %s97
      %p103 = scmp.eq.s32.totalorder %s16, 0
      %p104 = por %p102, %p103
      %p105 = scmp.ne.s32.totalorder %s94, %s97
      %p106 = scmp.eq.s32.totalorder %s21, 3
      %p107 = por %p105, %p106
      %p108 = scmp.ne.s32.totalorder %s97, %s98
      %p109 = scmp.eq.s32.totalorder %s21, 0
      %p110 = por %p108, %p109
      %p111 = scmp.ne.s32.totalorder %s97, %s98
      %p112 = scmp.eq.s32.totalorder %s22, 3
      %p113 = por %p111, %p112
      %p115 = scmp.ne.s32.totalorder %s98, %s114
      %p116 = scmp.eq.s32.totalorder %s22, 0
      %p117 = por %p115, %p116
      %s118 = ssub.s32 %s24, %s31
      %s119 = ssub.s32 %s23, %s35
      %s120 = sor.u32 %s118, %s119
      %p121 = scmp.eq.s32.totalorder %s120, 0
      %s123 = sadd.s32 %s122, 1
      %s124 = scalar_select %p121, %s122, %s123
      %p127 = pneg %p121
      %p128 = scmp.eq.s32.totalorder %s16, 3
      %p129 = por %p127, %p128
      %p130 = scmp.ne.s32.totalorder %s122, %s125
      %p131 = scmp.eq.s32.totalorder %s16, 0
      %p132 = por %p130, %p131
      %p133 = scmp.ne.s32.totalorder %s122, %s125
      %p134 = scmp.eq.s32.totalorder %s21, 3
      %p135 = por %p133, %p134
      %p136 = scmp.ne.s32.totalorder %s125, %s126
      %p137 = scmp.eq.s32.totalorder %s21, 0
      %p138 = por %p136, %p137
      %p139 = scmp.ne.s32.totalorder %s125, %s126
      %p140 = scmp.eq.s32.totalorder %s22, 3
      %p141 = por %p139, %p140
      %p143 = scmp.ne.s32.totalorder %s126, %s142
      %p144 = scmp.eq.s32.totalorder %s22, 0
      %p145 = por %p143, %p144
      %p146 = scmp.le.s32.totalorder 1, %s16
      %p147 = scmp.lt.s32.totalorder %s16, 5
      %p148 = pnand %p146, %p147
      %p149 = pneg %p148
      // Predicated region
      $region9: #{tpu_custom_call.1} parent=5 // pred_check
        _
      $region10: #{tpu_custom_call.1} parent=5 // pred_check_branch
        %151 = sbr.rel (%p148) target = $region12
      $region11: #{tpu_custom_call.1} parent=5 // pred_region
        %s152 = ssub.s32 %s16, 1
        // Predicated region
        $region13: #{tpu_custom_call.1} parent=11 // pred_check
          %p153 = pneg %p82
        $region14: #{tpu_custom_call.1} parent=11 // pred_check_branch
          %155 = sbr.rel (%p153) target = $region16
        $region15: #{tpu_custom_call.1} parent=11 // pred_region
          %s156 = smul.u32 4, %s25
          %s158 = ssub.s32 2048, 2048
          %159 = vsyncadd [#allocation6], %s158
          %s160 = smul.addr %s156, 128
          %s161 = scalar_lea.hbm %s1, %s160
          %s162 = sshll.u32 [#allocation5], 4
          %s163 = int_to_ptr.vmem [resolvable:$true] %s162
          %168 = dma.hbm_to_vmem [thread:$0]  %s161, 2048, %s163, [#allocation6], 128, 128, 8
        $region16: #{tpu_custom_call.1} parent=11 // pred_fallthru
          _
      $region12: #{tpu_custom_call.1} parent=5 // pred_fallthru
        _
      %p169 = scmp.lt.s32.totalorder %s16, 4
      // Predicated region
      $region17: #{tpu_custom_call.1} parent=5 // pred_check
        %p170 = pneg %p169
      $region18: #{tpu_custom_call.1} parent=5 // pred_check_branch
        %172 = sbr.rel (%p170) target = $region20
      $region19: #{tpu_custom_call.1} parent=5 // pred_region
        // Predicated region
        $region21: #{tpu_custom_call.1} parent=19 // pred_check
          %p173 = pneg %p50
        $region22: #{tpu_custom_call.1} parent=19 // pred_check_branch
          %175 = sbr.rel (%p173) target = $region24
        $region23: #{tpu_custom_call.1} parent=19 // pred_region
          %s176 = sand.u32 %s16, 1
          %s177 = scalar_lea.sflag [#allocation3], %s176
          %s178 = sand.u32 %s40, 1
          %s179 = smul.addr %s178, 128
          %s180 = scalar_lea.vmem [#allocation2], %s179
          %s181 = smul.u32 4, %s23
          %s183 = ssub.s32 2048, 2048
          %184 = vsyncadd %s177, %s183
          %s185 = smul.addr %s24, 16
          %s186 = sadd.s32 %s181, %s185
          %s187 = smul.addr %s186, 128
          %s188 = scalar_lea.hbm %s0, %s187
          %s189 = sshll.u32 %s180, 4
          %s190 = int_to_ptr.vmem [resolvable:$true] %s189
          %195 = dma.hbm_to_vmem [thread:$0]  %s188, 2048, %s190, %s177, 128, 128, 8
        $region24: #{tpu_custom_call.1} parent=19 // pred_fallthru
          _
        // Predicated region
        $region25: #{tpu_custom_call.1} parent=19 // pred_check
          %p196 = pneg %p104
        $region26: #{tpu_custom_call.1} parent=19 // pred_check_branch
          %198 = sbr.rel (%p196) target = $region28
        $region27: #{tpu_custom_call.1} parent=19 // pred_region
          %s199 = sand.u32 %s16, 1
          %s200 = scalar_lea.sflag [#allocation3], %s199
          %s201 = sand.u32 %s94, 1
          %s202 = smul.addr %s201, 8
          %s203 = scalar_lea.vmem [#allocation7], %s202
          %s205 = ssub.s32 128, 128
          %206 = vsyncadd %s200, %s205
          %s207 = sadd.s32 %s23, %s24
          %s208 = smul.addr %s207, 128
          %s209 = scalar_lea.hbm %s2, %s208
          %s211 = sshll.u32 %s203, 4
          %s212 = int_to_ptr.vmem [resolvable:$true] %s211
          %214 = dma.hbm_to_vmem [thread:$0]  %s209, 128, %s212, %s200
        $region28: #{tpu_custom_call.1} parent=19 // pred_fallthru
          _
      $region20: #{tpu_custom_call.1} parent=5 // pred_fallthru
        _
      %p215 = scmp.le.s32.totalorder 1, %s16
      %p216 = scmp.lt.s32.totalorder %s16, 5
      %p217 = pnand %p215, %p216
      %p218 = pneg %p217
      // Predicated region
      $region29: #{tpu_custom_call.1} parent=5 // pred_check
        _
      $region30: #{tpu_custom_call.1} parent=5 // pred_check_branch
        %220 = sbr.rel (%p217) target = $region32
      $region31: #{tpu_custom_call.1} parent=5 // pred_region
        %s221 = ssub.s32 %s16, 1
        %s222 = sand.u32 %s21, 1
        %s223 = scalar_lea.sflag [#allocation3], %s222
        %s224 = sand.u32 %s43, 1
        %s225 = smul.addr %s224, 128
        %s226 = scalar_lea.vmem [#allocation2], %s225
        // Predicated region
        $region33: #{tpu_custom_call.1} parent=31 // pred_check
          %p227 = pneg %p56
        $region34: #{tpu_custom_call.1} parent=31 // pred_check_branch
          %229 = sbr.rel (%p227) target = $region36
        $region35: #{tpu_custom_call.1} parent=31 // pred_region
          %230 = dma.done %s223, 2048
        $region36: #{tpu_custom_call.1} parent=31 // pred_fallthru
          _
        // Predicated region
        $region37: #{tpu_custom_call.1} parent=31 // pred_check
          %p231 = pneg %p82
        $region38: #{tpu_custom_call.1} parent=31 // pred_check_branch
          %233 = sbr.rel (%p231) target = $region40
        $region39: #{tpu_custom_call.1} parent=31 // pred_region
          %234 = dma.done [#allocation6], 2048
        $region40: #{tpu_custom_call.1} parent=31 // pred_fallthru
          _
        %s235 = sand.u32 %s21, 1
        %s236 = scalar_lea.sflag [#allocation3], %s235
        %s237 = sand.u32 %s97, 1
        %s238 = smul.addr %s237, 8
        %s239 = scalar_lea.vmem [#allocation7], %s238
        // Predicated region
        $region41: #{tpu_custom_call.1} parent=31 // pred_check
          %p240 = pneg %p110
        $region42: #{tpu_custom_call.1} parent=31 // pred_check_branch
          %242 = sbr.rel (%p240) target = $region44
        $region43: #{tpu_custom_call.1} parent=31 // pred_region
          %243 = dma.done %s236, 128
        $region44: #{tpu_custom_call.1} parent=31 // pred_fallthru
          _
        %s244 = sand.u32 %s21, 1
        %s245 = scalar_lea.sflag [#allocation3], %s244
        %s246 = sand.u32 %s43, 1
        %s247 = smul.addr %s246, 128
        %s248 = scalar_lea.vmem [#allocation2], %s247
        %p249 = pneg %p56
        %p250 = pneg %p53
        %p251 = pneg %p82
        %p252 = pneg %p79
        %s253 = sand.u32 %s21, 1
        %s254 = scalar_lea.sflag [#allocation3], %s253
        %s255 = sand.u32 %s97, 1
        %s256 = smul.addr %s255, 8
        %s257 = scalar_lea.vmem [#allocation7], %s256
        %p258 = pneg %p110
        %p259 = pneg %p107
        %p260 = pneg %p138
        %p261 = pneg %p135
        %s262 = sand.u32 %s125, 1
        %s263 = scalar_lea.sflag [#allocation4], %s262
        %s264 = sand.u32 %s125, 1
        %s265 = smul.addr %s264, 8
        %s266 = scalar_lea.vmem [#allocation8], %s265
        %s267 = smul.u32 4, %s25
        %s268 = smul.u32 4, %s25
        %v269 = vld [vmem:[%s226] sm:$0xff]
        %v270 = vld [vmem:[%s226 + $0x8] sm:$0xff]
        %v271 = vld [vmem:[%s226 + $0x10] sm:$0xff]
        %v272 = vld [vmem:[%s226 + $0x18] sm:$0xff]
        %v273 = vld [vmem:[%s226 + $0x20] sm:$0xff]
        %v274 = vld [vmem:[%s226 + $0x28] sm:$0xff]
        %v275 = vld [vmem:[%s226 + $0x30] sm:$0xff]
        %v276 = vld [vmem:[%s226 + $0x38] sm:$0xff]
        %v277 = vld [vmem:[%s226 + $0x40] sm:$0xff]
        %v278 = vld [vmem:[%s226 + $0x48] sm:$0xff]
        %v279 = vld [vmem:[%s226 + $0x50] sm:$0xff]
        %v280 = vld [vmem:[%s226 + $0x58] sm:$0xff]
        %v281 = vld [vmem:[%s226 + $0x60] sm:$0xff]
        %v282 = vld [vmem:[%s226 + $0x68] sm:$0xff]
        %v283 = vld [vmem:[%s226 + $0x70] sm:$0xff]
        %v284 = vld [vmem:[%s226 + $0x78] sm:$0xff]
        %v285 = vld [vmem:[%s239] sm:$0xff]
        %v286 = vunpack.c.0.s8 %v285
        %v287 = vunpack.c.1.s8 %v285
        %v288 = vunpack.c.2.s8 %v285
        %v289 = vunpack.c.3.s8 %v285
        %v290 = vmax.f32 %v269, %v273
        %v291 = vmax.f32 %v290, %v277
        %v292 = vmax.f32 %v291, %v281
        %v293 = vmax.f32 %v270, %v274
        %v294 = vmax.f32 %v293, %v278
        %v295 = vmax.f32 %v294, %v282
        %v296 = vmax.f32 %v271, %v275
        %v297 = vmax.f32 %v296, %v279
        %v298 = vmax.f32 %v297, %v283
        %v299 = vmax.f32 %v272, %v276
        %v300 = vmax.f32 %v299, %v280
        %v301 = vmax.f32 %v300, %v284
        %v302 = vsub.f32 %v269, %v292
        %v303 = vsub.f32 %v270, %v295
        %v304 = vsub.f32 %v271, %v298
        %v305 = vsub.f32 %v272, %v301
        %v306 = vsub.f32 %v273, %v292
        %v307 = vsub.f32 %v274, %v295
        %v308 = vsub.f32 %v275, %v298
        %v309 = vsub.f32 %v276, %v301
        %v310 = vsub.f32 %v277, %v292
        %v311 = vsub.f32 %v278, %v295
        %v312 = vsub.f32 %v279, %v298
        %v313 = vsub.f32 %v280, %v301
        %v314 = vsub.f32 %v281, %v292
        %v315 = vsub.f32 %v282, %v295
        %v316 = vsub.f32 %v283, %v298
        %v317 = vsub.f32 %v284, %v301
        %v318 = vmul.f32 %v302, 1.442695
        %v319 = vpow.pop %v318
        %v320 = vmul.f32 %v303, 1.442695
        %v321 = vpow.pop %v320
        %v322 = vmul.f32 %v304, 1.442695
        %v323 = vpow.pop %v322
        %v324 = vmul.f32 %v305, 1.442695
        %v325 = vpow.pop %v324
        %v326 = vmul.f32 %v306, 1.442695
        %v327 = vpow.pop %v326
        %v328 = vmul.f32 %v307, 1.442695
        %v329 = vpow.pop %v328
        %v330 = vmul.f32 %v308, 1.442695
        %v331 = vpow.pop %v330
        %v332 = vmul.f32 %v309, 1.442695
        %v333 = vpow.pop %v332
        %v334 = vmul.f32 %v310, 1.442695
        %v335 = vpow.pop %v334
        %v336 = vmul.f32 %v311, 1.442695
        %v337 = vpow.pop %v336
        %v338 = vmul.f32 %v312, 1.442695
        %v339 = vpow.pop %v338
        %v340 = vmul.f32 %v313, 1.442695
        %v341 = vpow.pop %v340
        %v342 = vmul.f32 %v314, 1.442695
        %v343 = vpow.pop %v342
        %v344 = vmul.f32 %v315, 1.442695
        %v345 = vpow.pop %v344
        %v346 = vmul.f32 %v316, 1.442695
        %v347 = vpow.pop %v346
        %v348 = vmul.f32 %v317, 1.442695
        %v349 = vpow.pop %v348
        %v350 = vadd.f32 %v319, %v327
        %v351 = vadd.f32 %v350, %v335
        %v352 = vadd.f32 %v351, %v343
        %v353 = vadd.f32 %v321, %v329
        %v354 = vadd.f32 %v353, %v337
        %v355 = vadd.f32 %v354, %v345
        %v356 = vadd.f32 %v323, %v331
        %v357 = vadd.f32 %v356, %v339
        %v358 = vadd.f32 %v357, %v347
        %v359 = vadd.f32 %v325, %v333
        %v360 = vadd.f32 %v359, %v341
        %v361 = vadd.f32 %v360, %v349
        %v362 = vlog2.pop %v352
        %v363 = vmul.f32 %v362, 0.6931472
        %v364 = vlog2.pop %v355
        %v365 = vmul.f32 %v364, 0.6931472
        %v366 = vlog2.pop %v358
        %v367 = vmul.f32 %v366, 0.6931472
        %v368 = vlog2.pop %v361
        %v369 = vmul.f32 %v368, 0.6931472
        %v370 = vadd.f32 %v292, %v363
        %v371 = vadd.f32 %v295, %v365
        %v372 = vadd.f32 %v298, %v367
        %v373 = vadd.f32 %v301, %v369
        %vm374 = vcmp.eq.s32.totalorder %v286, 0
        %vm375 = vcmp.eq.s32.totalorder %v287, 0
        %vm376 = vcmp.eq.s32.totalorder %v288, 0
        %vm377 = vcmp.eq.s32.totalorder %v289, 0
        %vm378 = vcmp.eq.s32.totalorder %v286, 1
        %vm379 = vcmp.eq.s32.totalorder %v287, 1
        %vm380 = vcmp.eq.s32.totalorder %v288, 1
        %vm381 = vcmp.eq.s32.totalorder %v289, 1
        %vm382 = vcmp.eq.s32.totalorder %v286, 2
        %vm383 = vcmp.eq.s32.totalorder %v287, 2
        %vm384 = vcmp.eq.s32.totalorder %v288, 2
        %vm385 = vcmp.eq.s32.totalorder %v289, 2
        %vm386 = vcmp.eq.s32.totalorder %v286, 3
        %vm387 = vcmp.eq.s32.totalorder %v287, 3
        %vm388 = vcmp.eq.s32.totalorder %v288, 3
        %vm389 = vcmp.eq.s32.totalorder %v289, 3
        %v390 = vsel %vm374, %v269, 0.0
        %v391 = vsel %vm375, %v270, 0.0
        %v392 = vsel %vm376, %v271, 0.0
        %v393 = vsel %vm377, %v272, 0.0
        %v394 = vsel %vm378, %v273, 0.0
        %v395 = vsel %vm379, %v274, 0.0
        %v396 = vsel %vm380, %v275, 0.0
        %v397 = vsel %vm381, %v276, 0.0
        %v398 = vsel %vm382, %v277, 0.0
        %v399 = vsel %vm383, %v278, 0.0
        %v400 = vsel %vm384, %v279, 0.0
        %v401 = vsel %vm385, %v280, 0.0
        %v402 = vsel %vm386, %v281, 0.0
        %v403 = vsel %vm387, %v282, 0.0
        %v404 = vsel %vm388, %v283, 0.0
        %v405 = vsel %vm389, %v284, 0.0
        %v406 = vadd.f32 %v390, %v394
        %v407 = vadd.f32 %v406, %v398
        %v408 = vadd.f32 %v407, %v402
        %v409 = vadd.f32 %v391, %v395
        %v410 = vadd.f32 %v409, %v399
        %v411 = vadd.f32 %v410, %v403
        %v412 = vadd.f32 %v392, %v396
        %v413 = vadd.f32 %v412, %v400
        %v414 = vadd.f32 %v413, %v404
        %v415 = vadd.f32 %v393, %v397
        %v416 = vadd.f32 %v415, %v401
        %v417 = vadd.f32 %v416, %v405
        %v418 = vld [vmem:[#allocation5] sm:$0xff]
        %v419 = vld [vmem:[#allocation5 + $0x8] sm:$0xff]
        %v420 = vld [vmem:[#allocation5 + $0x10] sm:$0xff]
        %v421 = vld [vmem:[#allocation5 + $0x18] sm:$0xff]
        %v422 = vld [vmem:[#allocation5 + $0x20] sm:$0xff]
        %v423 = vld [vmem:[#allocation5 + $0x28] sm:$0xff]
        %v424 = vld [vmem:[#allocation5 + $0x30] sm:$0xff]
        %v425 = vld [vmem:[#allocation5 + $0x38] sm:$0xff]
        %v426 = vld [vmem:[#allocation5 + $0x40] sm:$0xff]
        %v427 = vld [vmem:[#allocation5 + $0x48] sm:$0xff]
        %v428 = vld [vmem:[#allocation5 + $0x50] sm:$0xff]
        %v429 = vld [vmem:[#allocation5 + $0x58] sm:$0xff]
        %v430 = vld [vmem:[#allocation5 + $0x60] sm:$0xff]
        %v431 = vld [vmem:[#allocation5 + $0x68] sm:$0xff]
        %v432 = vld [vmem:[#allocation5 + $0x70] sm:$0xff]
        %v433 = vld [vmem:[#allocation5 + $0x78] sm:$0xff]
        %v434 = vsel %vm374, %v418, 0.0
        %v435 = vsel %vm375, %v419, 0.0
        %v436 = vsel %vm376, %v420, 0.0
        %v437 = vsel %vm377, %v421, 0.0
        %v438 = vsel %vm378, %v422, 0.0
        %v439 = vsel %vm379, %v423, 0.0
        %v440 = vsel %vm380, %v424, 0.0
        %v441 = vsel %vm381, %v425, 0.0
        %v442 = vsel %vm382, %v426, 0.0
        %v443 = vsel %vm383, %v427, 0.0
        %v444 = vsel %vm384, %v428, 0.0
        %v445 = vsel %vm385, %v429, 0.0
        %v446 = vsel %vm386, %v430, 0.0
        %v447 = vsel %vm387, %v431, 0.0
        %v448 = vsel %vm388, %v432, 0.0
        %v449 = vsel %vm389, %v433, 0.0
        %v450 = vadd.f32 %v434, %v438
        %v451 = vadd.f32 %v450, %v442
        %v452 = vadd.f32 %v451, %v446
        %v453 = vadd.f32 %v435, %v439
        %v454 = vadd.f32 %v453, %v443
        %v455 = vadd.f32 %v454, %v447
        %v456 = vadd.f32 %v436, %v440
        %v457 = vadd.f32 %v456, %v444
        %v458 = vadd.f32 %v457, %v448
        %v459 = vadd.f32 %v437, %v441
        %v460 = vadd.f32 %v459, %v445
        %v461 = vadd.f32 %v460, %v449
        %v462 = vsub.f32 0.0, %v452
        %v463 = vsub.f32 0.0, %v455
        %v464 = vsub.f32 0.0, %v458
        %v465 = vsub.f32 0.0, %v461
        %v466 = vsub.f32 %v408, %v370
        %v467 = vsub.f32 %v411, %v371
        %v468 = vsub.f32 %v414, %v372
        %v469 = vsub.f32 %v417, %v373
        %v470 = vmul.f32 %v462, %v466
        %v471 = vmul.f32 %v463, %v467
        %v472 = vmul.f32 %v464, %v468
        %v473 = vmul.f32 %v465, %v469
        %v474 = vlaneseq
        %v475 = vshrl.u32 %v474, 7
        %v476 = vadd.s32 %v475, 8
        %v477 = vadd.s32 %v475, 16
        %v478 = vadd.s32 %v475, 24
        %s479 = smul.u32 %s25, 32
        %v480 = vstv %s479
        %v481 = vadd.s32 %v475, %v480
        %v482 = vadd.s32 %v476, %v480
        %v483 = vadd.s32 %v477, %v480
        %v484 = vadd.s32 %v478, %v480
        %v485 = vlaneseq
        %v486 = vand.u32 %v485, 127
        %v487 = vmul.u32 %v481, 128
        %v488 = vmul.u32 %v482, 128
        %v489 = vmul.u32 %v483, 128
        %v490 = vmul.u32 %v484, 128
        %v491 = vadd.s32 %v487, %v486
        %v492 = vadd.s32 %v488, %v486
        %v493 = vadd.s32 %v489, %v486
        %v494 = vadd.s32 %v490, %v486
        %vm495 = vcmp.lt.s32.totalorder %v491, 2048
        %vm496 = vcmp.lt.s32.totalorder %v492, 2048
        %vm497 = vcmp.lt.s32.totalorder %v493, 2048
        %vm498 = vcmp.lt.s32.totalorder %v494, 2048
        %v499 = vsel %vm495, %v470, 0.0
        %v500 = vsel %vm496, %v471, 0.0
        %v501 = vsel %vm497, %v472, 0.0
        %v502 = vsel %vm498, %v473, 0.0
        %v503 = vadd.f32 %v499, %v500
        %v504 = vadd.f32 %v503, %v501
        %v505 = vadd.f32 %v504, %v502
        %506 = vst [vmem:[%s266] sm:$0xff] %v505
        %s507 = sand.u32 %s125, 1
        %s508 = scalar_lea.sflag [#allocation4], %s507
        %s509 = sand.u32 %s125, 1
        %s510 = smul.addr %s509, 8
        %s511 = scalar_lea.vmem [#allocation8], %s510
        // Predicated region
        $region45: #{tpu_custom_call.1} parent=31 // pred_check
          %p512 = pneg %p135
        $region46: #{tpu_custom_call.1} parent=31 // pred_check_branch
          %514 = sbr.rel (%p512) target = $region48
        $region47: #{tpu_custom_call.1} parent=31 // pred_region
          %s516 = ssub.s32 128, 128
          %517 = vsyncadd %s508, %s516
          %s518 = sadd.s32 %s25, %s26
          %s519 = smul.addr %s518, 128
          %s520 = scalar_lea.hbm %s3, %s519
          %s522 = sshll.u32 %s511, 4
          %s523 = int_to_ptr.vmem [resolvable:$true] %s522
          %525 = dma.vmem_to_hbm [thread:$0]  %s523, 128, %s520, %s508
        $region48: #{tpu_custom_call.1} parent=31 // pred_fallthru
          _
      $region32: #{tpu_custom_call.1} parent=5 // pred_fallthru
        _
      %p526 = scmp.le.s32.totalorder 2, %s16
      // Predicated region
      $region49: #{tpu_custom_call.1} parent=5 // pred_check
        %p527 = pneg %p526
      $region50: #{tpu_custom_call.1} parent=5 // pred_check_branch
        %529 = sbr.rel (%p527) target = $region52
      $region51: #{tpu_custom_call.1} parent=5 // pred_region
        %s530 = ssub.s32 %s16, 2
        // Predicated region
        $region53: #{tpu_custom_call.1} parent=51 // pred_check
          %p531 = pneg %p141
        $region54: #{tpu_custom_call.1} parent=51 // pred_check_branch
          %533 = sbr.rel (%p531) target = $region56
        $region55: #{tpu_custom_call.1} parent=51 // pred_region
          %s534 = sand.u32 %s126, 1
          %s535 = scalar_lea.sflag [#allocation4], %s534
          %s536 = sand.u32 %s126, 1
          %s537 = smul.addr %s536, 8
          %s538 = scalar_lea.vmem [#allocation8], %s537
          %539 = dma.done %s535, 128
        $region56: #{tpu_custom_call.1} parent=51 // pred_fallthru
          _
      $region52: #{tpu_custom_call.1} parent=5 // pred_fallthru
        _
    $region6: #{tpu_custom_call.1} parent=1 // loop_footer
      %s20 = sadd.s32 1, %s16
    $region7: #{tpu_custom_call.1} parent=1 // loop_footer_branch
      %15 = sbr.rel target = $region3
    $region8: #{tpu_custom_call.1} parent=1 // loop_exit
      _
    %540 = vsyncpa [#allocation3], 1
    %s541 = scalar_lea.sflag [#allocation3], 1
    %542 = vsyncpa %s541, 1
    %543 = vsyncpa [#allocation6], 1
    %544 = vsyncpa [#allocation4], 1
    %s545 = scalar_lea.sflag [#allocation4], 1
    %546 = vsyncpa %s545, 1

</llo_original>
